<compile_context>
chip_gen: v6e
topology: v6e:2x2x1
jax: 0.10.0
libtpu: 0.0.40
codegen_flags: <defaults>
</compile_context>

<pallas_src>
import functools
import math

import jax
import jax.numpy as jnp
from jax.experimental import pallas as pl
from jax.experimental.pallas import tpu as pltpu

INF = 10000000000.0
_VMEM_LIMIT = 32 * 1024 * 1024   # safe on v5e/v6e/v7x; raises v5e's 16 MiB default


def _round_up(x, m):
    return ((x + m - 1) // m) * m


# ----------------------------- tiled linear ------------------------------- #
def _linear_kernel(x_ref, w_ref, b_ref, o_ref, acc_ref, *, compute_dtype):
    k = pl.program_id(2)

    @pl.when(k == 0)
    def _():
        acc_ref[...] = jnp.zeros_like(acc_ref)

    acc_ref[...] += jnp.dot(x_ref[...].astype(compute_dtype),
                            w_ref[...].astype(compute_dtype),
                            preferred_element_type=jnp.float32)

    @pl.when(k == pl.num_programs(2) - 1)
    def _():
        o_ref[...] = (acc_ref[...] + b_ref[...]).astype(o_ref.dtype)


def linear(x, w, b, *, tm_pref=256, tn_pref=512, tk_pref=512,
           compute_dtype=jnp.float32):
    """x: (N, K), w: (K, M), b: (M,) -> (N, M). Tiled + pipelined; awkward
    dims are zero-padded up to the tile (no huge full-dim fallback blocks)."""
    N, K = x.shape
    _, M = w.shape
    m_align = 16 if compute_dtype == jnp.bfloat16 else 8
    tm = min(tm_pref, _round_up(N, m_align))
    tn = min(tn_pref, _round_up(M, 128))
    tk = min(tk_pref, _round_up(K, 128))
    Np, Kp, Mp = _round_up(N, tm), _round_up(K, tk), _round_up(M, tn)
    xp = jnp.pad(x, ((0, Np - N), (0, Kp - K))) if (Np, Kp) != (N, K) else x
    wp = jnp.pad(w, ((0, Kp - K), (0, Mp - M))) if (Kp, Mp) != (K, M) else w
    bp = (jnp.pad(b, (0, Mp - M)) if Mp != M else b).reshape(1, Mp)

    kern = functools.partial(_linear_kernel, compute_dtype=compute_dtype)
    out = pl.pallas_call(
        kern,
        out_shape=jax.ShapeDtypeStruct((Np, Mp), jnp.float32),
        grid_spec=pltpu.PrefetchScalarGridSpec(
            num_scalar_prefetch=0,
            grid=(Np // tm, Mp // tn, Kp // tk),
            in_specs=[
                pl.BlockSpec((tm, tk), lambda i, j, k: (i, k)),
                pl.BlockSpec((tk, tn), lambda i, j, k: (k, j)),
                pl.BlockSpec((1, tn), lambda i, j, k: (0, j)),
            ],
            out_specs=pl.BlockSpec((tm, tn), lambda i, j, k: (i, j)),
            scratch_shapes=[pltpu.VMEM((tm, tn), jnp.float32)],
        ),
        compiler_params=pltpu.CompilerParams(
            dimension_semantics=("parallel", "parallel", "arbitrary"),
            vmem_limit_bytes=_VMEM_LIMIT),
    )(xp, wp, bp)
    if (Np, Mp) != (N, M):
        out = out[:N, :M]
    return out


# ------------------------- relative-attention core ------------------------ #
def _rel_attn_kernel(q_ref, k_ref, v_ref, relk_ref, relv_ref, o_ref,
                     m_ref, l_ref, acc_ref, *, n_head, d, kmax, compute_dtype):
    # q_ref: (1, tq, nx); k_ref/v_ref: (1, tk, nx); rel tables: (kmax+1, d)
    tq = q_ref.shape[1]
    tk = k_ref.shape[1]
    qi = pl.program_id(1)
    kv = pl.program_id(2)
    inv_sqrt_d = 1.0 / math.sqrt(d)

    @pl.when(kv == 0)
    def _init():
        m_ref[...] = jnp.full(m_ref.shape, -jnp.inf, m_ref.dtype)
        l_ref[...] = jnp.zeros(l_ref.shape, l_ref.dtype)
        acc_ref[...] = jnp.zeros(acc_ref.shape, acc_ref.dtype)

    # Skip KV tiles that lie entirely above the causal diagonal.
    reachable = kv * tk <= qi * tq + (tq - 1)

    @pl.when(reachable)
    def _compute():
        q = q_ref[0].astype(compute_dtype)          # (tq, nx)
        kt = k_ref[0].astype(compute_dtype)         # (tk, nx)
        vt = v_ref[0].astype(compute_dtype)         # (tk, nx)
        relk = relk_ref[...].astype(compute_dtype)  # (kmax+1, d)
        relv = relv_ref[...].astype(compute_dtype)  # (kmax+1, d)

        # Global row/col offsets for this tile, built in-kernel (no (T,T)
        # tables).  Only rel ids r in [0, kmax] are reachable under the causal
        # mask; masks are hoisted out of the head loop and reused by both the
        # rel-key expansion and the rel-value aggregation.
        row = qi * tq + jax.lax.broadcasted_iota(jnp.int32, (tq, tk), 0)
        col = kv * tk + jax.lax.broadcasted_iota(jnp.int32, (tq, tk), 1)
        off = col - row
        causal = off <= 0
        rel_masks = [(off <= -kmax) if r == 0 else (off == (r - kmax))
                     for r in range(kmax + 1)]

        for h in range(n_head):
            sl = slice(h * d, (h + 1) * d)
            q_h, k_h, v_h = q[:, sl], kt[:, sl], vt[:, sl]

            # scores: q @ k^T  (MXU, contract over d)
            s = jax.lax.dot_general(q_h, k_h, (((1,), (1,)), ((), ())),
                                    preferred_element_type=jnp.float32)
            # relative-key term: (q @ rel_keys^T)[i, rel_id(i, j)]
            qrel = jax.lax.dot_general(q_h, relk, (((1,), (1,)), ((), ())),
                                       preferred_element_type=jnp.float32)
            wrel = jnp.zeros((tq, tk), jnp.float32)
            for r in range(kmax + 1):
                wrel = wrel + jnp.where(rel_masks[r], qrel[:, r:r + 1], 0.0)
            s = (s + wrel) * inv_sqrt_d                      # scale=True
            s = jnp.where(causal, s, -INF)

            # online softmax state (f32)
            m_prev = m_ref[:, h:h + 1]                       # (tq, 1)
            m_new = jnp.maximum(m_prev, jnp.max(s, axis=-1, keepdims=True))
            alpha = jnp.exp(m_prev - m_new)
            p = jnp.exp(s - m_new)                           # (tq, tk), f32
            l_ref[:, h:h + 1] = alpha * l_ref[:, h:h + 1] + \
                jnp.sum(p, axis=-1, keepdims=True)

            # relative-value term: banded aggregation of p -> (tq, kmax+1)
            prel = jnp.concatenate(
                [jnp.sum(jnp.where(rel_masks[r], p, 0.0), axis=-1,
                         keepdims=True) for r in range(kmax + 1)], axis=-1)

            pc = p.astype(compute_dtype)
            acc_ref[h] = (alpha * acc_ref[h]
                          + jnp.dot(pc, v_h,
                                    preferred_element_type=jnp.float32)
                          + jnp.dot(prel.astype(compute_dtype), relv,
                                    preferred_element_type=jnp.float32))
            m_ref[:, h:h + 1] = m_new

    @pl.when(kv == pl.num_programs(2) - 1)
    def _finalize():
        # exact reciprocal so the 1e-4 unit test passes; approx=True in prod.
        inv_l = pl.reciprocal(l_ref[...], approx=False)      # (tq, n_head)
        outs = [acc_ref[h] * inv_l[:, h:h + 1] for h in range(n_head)]
        # single lane-dense (tq, nx) store in merged-heads layout
        o_ref[0] = jnp.concatenate(outs, axis=-1).astype(o_ref.dtype)


def _pick_seq_tile(T, pref):
    t = min(pref, T)
    t = (t // 8) * 8
    while t >= 8:
        if T % t == 0:
            return t
        t -= 8
    return T  # full extent (always legal); only hit for odd tiny T


def rel_attention_core(q, k, v, rel_keys, rel_values, *, n_head, kmax,
                       tq_pref=256, tk_pref=256, compute_dtype=jnp.float32):
    """q/k/v: (B, T, nx) with heads merged on the lane axis.
    rel tables: (kmax+1, d).  Returns (B, T, nx), heads already merged."""
    B, T, nx = q.shape
    d = nx // n_head
    tq = _pick_seq_tile(T, tq_pref)
    tk = _pick_seq_tile(T, tk_pref)
    kern = functools.partial(_rel_attn_kernel, n_head=n_head, d=d, kmax=kmax,
                             compute_dtype=compute_dtype)
    return pl.pallas_call(
        kern,
        out_shape=jax.ShapeDtypeStruct((B, T, nx), jnp.float32),
        grid_spec=pltpu.PrefetchScalarGridSpec(
            num_scalar_prefetch=0,
            grid=(B, T // tq, T // tk),
            in_specs=[
                pl.BlockSpec((1, tq, nx), lambda b, qi, kv: (b, qi, 0)),
                pl.BlockSpec((1, tk, nx), lambda b, qi, kv: (b, kv, 0)),
                pl.BlockSpec((1, tk, nx), lambda b, qi, kv: (b, kv, 0)),
                pl.BlockSpec((kmax + 1, d), lambda b, qi, kv: (0, 0)),
                pl.BlockSpec((kmax + 1, d), lambda b, qi, kv: (0, 0)),
            ],
            out_specs=pl.BlockSpec((1, tq, nx), lambda b, qi, kv: (b, qi, 0)),
            scratch_shapes=[
                pltpu.VMEM((tq, n_head), jnp.float32),      # running max m
                pltpu.VMEM((tq, n_head), jnp.float32),      # running sum l
                pltpu.VMEM((n_head, tq, d), jnp.float32),   # output acc
            ],
        ),
        compiler_params=pltpu.CompilerParams(
            dimension_semantics=("parallel", "parallel", "arbitrary"),
            vmem_limit_bytes=_VMEM_LIMIT),
    )(q, k, v, rel_keys, rel_values)


# ------------------------------ full forward ------------------------------ #
def relative_attention_forward(x, params, *, compute_dtype=jnp.float32):
    # compute_dtype=jnp.bfloat16 for v5e/v6e/v7x production (MXU operands only;
    # logits / softmax / accumulators stay f32).  f32 here for the 1e-4 test.
    B, T, nx = x.shape
    H = params["n_head"]
    kmax = params["rel_kmax"]
    x2 = x.reshape(B * T, nx)
    w, b = params["c_attn_w"], params["c_attn_b"]

    # c_attn as three tiled matmuls -> separate q/k/v, each with its own
    # BlockSpec in the attention kernel (no fused-qkv intermediate / slices).
    q = linear(x2, w[:, :nx], b[:nx], compute_dtype=compute_dtype)
    k = linear(x2, w[:, nx:2 * nx], b[nx:2 * nx], compute_dtype=compute_dtype)
    v = linear(x2, w[:, 2 * nx:], b[2 * nx:], compute_dtype=compute_dtype)
    q = q.reshape(B, T, nx)
    k = k.reshape(B, T, nx)
    v = v.reshape(B, T, nx)

    # rows r > kmax of the rel tables are unreachable under the causal mask.
    a = rel_attention_core(q, k, v,
                           params["rel_keys"][:kmax + 1],
                           params["rel_values"][:kmax + 1],
                           n_head=H, kmax=kmax, compute_dtype=compute_dtype)

    out = linear(a.reshape(B * T, nx), params["c_proj_w"], params["c_proj_b"],
                 compute_dtype=compute_dtype)
    return out.reshape(B, T, nx)


# -------------------------- pure-JAX reference ----------------------------- #
def reference_forward(x, params):
    B, T, nx = x.shape
    H = params["n_head"]
    d = nx // H
    qkv = x @ params["c_attn_w"] + params["c_attn_b"]
    q = qkv[..., :nx].reshape(B, T, H, d).transpose(0, 2, 1, 3)
    k = qkv[..., nx:2 * nx].reshape(B, T, H, d).transpose(0, 2, 3, 1)
    v = qkv[..., 2 * nx:].reshape(B, T, H, d).transpose(0, 2, 1, 3)
    w = jnp.einsum("bhid,bhdj->bhij", q, k)
    rel_ids = params["rel_ids"][:T, :T]
    relk = params["rel_keys"][rel_ids]
    relv = params["rel_values"][rel_ids]
    w = w + jnp.einsum("bhid,ijd->bhij", q, relk)
    w = w / math.sqrt(d)
    b = jnp.tril(jnp.ones((T, T), jnp.float32))[None, None]
    w = w * b - INF * (1.0 - b)
    p = jax.nn.softmax(w, axis=-1)
    ret = jnp.einsum("bhij,bhjd->bhid", p, v)
    ret = ret + jnp.einsum("bhij,ijd->bhid", p, relv)
    a = ret.transpose(0, 2, 1, 3).reshape(B, T, nx)
    return a @ params["c_proj_w"] + params["c_proj_b"]


# --------------------------------- main ------------------------------------ #
def init_params(key, nx, n_ctx, n_head, rel_kmax):
    d = nx // n_head
    kmax = min(rel_kmax, n_ctx)
    k1, k2, k3, k4, k5, k6 = jax.random.split(key, 6)
    idx = jnp.arange(n_ctx)
    rel_ids = jnp.clip(-idx[:, None] + idx[None, :], -kmax, kmax) + kmax
    return {
        "n_head": n_head,
        "rel_kmax": kmax,
        # weights stored (in, out); forward is x @ W + b (equiv. to nn.Linear)
        "c_attn_w": 0.02 * jax.random.normal(k1, (nx, 3 * nx), jnp.float32),
        "c_attn_b": 0.02 * jax.random.normal(k2, (3 * nx,), jnp.float32),
        "c_proj_w": 0.02 * jax.random.normal(k3, (nx, nx), jnp.float32),
        "c_proj_b": 0.02 * jax.random.normal(k4, (nx,), jnp.float32),
        "rel_keys": 0.02 * jax.random.normal(k5, (2 * kmax + 1, d), jnp.float32),
        "rel_values": 0.02 * jax.random.normal(k6, (2 * kmax + 1, d), jnp.float32),
        "rel_ids": rel_ids,  # reference only; kernel builds ids from iota
    }


if __name__ == "__main__":
    B, T, nx, H = 2, 8, 32, 4     # n_ctx = seq = 8, head_dim = 8
    key = jax.random.PRNGKey(0)
    kx, kp = jax.random.split(key)
    x = jax.random.normal(kx, (B, T, nx), jnp.float32)
    params = init_params(kp, nx, n_ctx=T, n_head=H, rel_kmax=4)

    out = relative_attention_forward(x, params)
    out = jax.block_until_ready(out)

    ref = reference_forward(x, params)
    assert out.shape == (B, T, nx)
    assert jnp.allclose(out, ref, atol=1e-4, rtol=1e-4), float(
        jnp.max(jnp.abs(out - ref)))
    print("KERNEL_OK")
</pallas_src>

<mosaic_0001>
module attributes {stable_mosaic.version = 11 : i64} {
  func.func @_linear_kernel(%arg0: i32, %arg1: i32, %arg2: i32, %arg3: memref<16x128xf32, #tpu.memory_space<vmem>>, %arg4: memref<128x128xf32, #tpu.memory_space<vmem>>, %arg5: memref<1x128xf32, #tpu.memory_space<vmem>>, %arg6: memref<16x128xf32, #tpu.memory_space<vmem>>, %arg7: memref<16x128xf32, #tpu.memory_space<vmem>>) attributes {dimension_semantics = [#tpu.dimension_semantics<parallel>, #tpu.dimension_semantics<parallel>, #tpu.dimension_semantics<arbitrary>], iteration_bounds = array<i64: 1, 1, 1>, scalar_prefetch = 0 : i64, scratch_operands = 1 : i64, tpu.core_type = #tpu.core_type<tc>, window_params = [{transform_indices = @transform_0, window_bounds = array<i64: 16, 128>}, {transform_indices = @transform_1, window_bounds = array<i64: 128, 128>}, {transform_indices = @transform_2, window_bounds = array<i64: 1, 128>}, {transform_indices = @transform_3, window_bounds = array<i64: 16, 128>}]} {
    %c0_i32 = arith.constant 0 : i32
    %0 = arith.cmpi eq, %arg2, %c0_i32 : i32
    %1 = arith.extui %0 : i1 to i32
    %c0_i32_0 = arith.constant 0 : i32
    %2 = arith.cmpi ne, %1, %c0_i32_0 : i32
    scf.if %2 {
      %cst_10 = arith.constant 0.000000e+00 : f32
      %12 = vector.broadcast %cst_10 : f32 to vector<16x128xf32>
      %c0_11 = arith.constant 0 : index
      %c0_12 = arith.constant 0 : index
      %13 = vector.load %arg7[%c0_11, %c0_12] : memref<16x128xf32, #tpu.memory_space<vmem>>, vector<16x128xf32>
      tpu.vector_store %arg7[%c0_11, %c0_12], %12 {strides = array<i32>} : memref<16x128xf32, #tpu.memory_space<vmem>>, vector<16x128xf32>,
    } else {
    }
    %c0 = arith.constant 0 : index
    %c0_1 = arith.constant 0 : index
    %3 = vector.load %arg7[%c0, %c0_1] : memref<16x128xf32, #tpu.memory_space<vmem>>, vector<16x128xf32>
    %c0_2 = arith.constant 0 : index
    %c0_3 = arith.constant 0 : index
    %4 = vector.load %arg3[%c0_2, %c0_3] : memref<16x128xf32, #tpu.memory_space<vmem>>, vector<16x128xf32>
    %c0_4 = arith.constant 0 : index
    %c0_5 = arith.constant 0 : index
    %5 = vector.load %arg4[%c0_4, %c0_5] : memref<128x128xf32, #tpu.memory_space<vmem>>, vector<128x128xf32>
    %cst = arith.constant dense<0.000000e+00> : vector<16x128xf32>
    %6 = tpu.matmul %4, %5, %cst {dimension_numbers = #tpu.dot_dimension_numbers<[1], [0], [0], [1], [0, 0, 1, 1], [], []>} : vector<16x128xf32>, vector<128x128xf32>, vector<16x128xf32> -> vector<16x128xf32>
    %7 = arith.addf %3, %6 : vector<16x128xf32>
    %c0_6 = arith.constant 0 : index
    %c0_7 = arith.constant 0 : index
    %8 = vector.load %arg7[%c0_6, %c0_7] : memref<16x128xf32, #tpu.memory_space<vmem>>, vector<16x128xf32>
    tpu.vector_store %arg7[%c0_6, %c0_7], %7 {strides = array<i32>} : memref<16x128xf32, #tpu.memory_space<vmem>>, vector<16x128xf32>,
    %c0_i32_8 = arith.constant 0 : i32
    %9 = arith.cmpi eq, %arg2, %c0_i32_8 : i32
    %10 = arith.extui %9 : i1 to i32
    %c0_i32_9 = arith.constant 0 : i32
    %11 = arith.cmpi ne, %10, %c0_i32_9 : i32
    scf.if %11 {
      %c0_10 = arith.constant 0 : index
      %c0_11 = arith.constant 0 : index
      %12 = vector.load %arg7[%c0_10, %c0_11] : memref<16x128xf32, #tpu.memory_space<vmem>>, vector<16x128xf32>
      %c0_12 = arith.constant 0 : index
      %c0_13 = arith.constant 0 : index
      %13 = vector.load %arg5[%c0_12, %c0_13] : memref<1x128xf32, #tpu.memory_space<vmem>>, vector<1x128xf32>
      %14 = vector.broadcast %13 : vector<1x128xf32> to vector<16x128xf32>
      %15 = arith.addf %12, %14 : vector<16x128xf32>
      %c0_14 = arith.constant 0 : index
      %c0_15 = arith.constant 0 : index
      %16 = vector.load %arg6[%c0_14, %c0_15] : memref<16x128xf32, #tpu.memory_space<vmem>>, vector<16x128xf32>
      tpu.vector_store %arg6[%c0_14, %c0_15], %15 {strides = array<i32>} : memref<16x128xf32, #tpu.memory_space<vmem>>, vector<16x128xf32>,
    } else {
    }
    return
  }
  func.func @transform_0(%arg0: i32, %arg1: i32, %arg2: i32) -> (i32, i32) {
    %c0_i32 = arith.constant 0 : i32
    return %arg0, %arg2 : i32, i32
  }
  func.func @transform_1(%arg0: i32, %arg1: i32, %arg2: i32) -> (i32, i32) {
    %c0_i32 = arith.constant 0 : i32
    return %arg2, %arg1 : i32, i32
  }
  func.func @transform_2(%arg0: i32, %arg1: i32, %arg2: i32) -> (i32, i32) {
    %c0_i32 = arith.constant 0 : i32
    %c0_i32_0 = arith.constant 0 : i32
    return %c0_i32, %arg1 : i32, i32
  }
  func.func @transform_3(%arg0: i32, %arg1: i32, %arg2: i32) -> (i32, i32) {
    %c0_i32 = arith.constant 0 : i32
    return %arg0, %arg1 : i32, i32
  }
}

</mosaic_0001>

<llo_original>
// kernel: tpu_custom_call.1
$region0: #{tpu_custom_call.1}
  #allocation0 [shape = 'u32[]', space=smem, size = 0x4, offset = 0x4, fixed_abs, tag = 'smem constant byte address 0x4 - core index']
  #allocation1 [shape = 'u32[144,128]{1,0:T(1,128)}', space=vmem, size = 0x12000, scoped, tag = 'internal scratch']
  #allocation2 [shape = 'f32[16,128]{1,0:T(8,128)}', space=vmem, size = 0x2000, scoped, tag = 'scratch operand']
  %s0 = inlined_call_operand.hbm [shape: f32[16,128], index: 0, kind: input, shape index: {}]
  %s1 = inlined_call_operand.hbm [shape: f32[128,128], index: 1, kind: input, shape index: {}]
  %s2 = inlined_call_operand.vmem [shape: f32[1,128], index: 2, kind: input, shape index: {}]
  %s3 = inlined_call_operand.hbm [shape: f32[16,128], index: 3, kind: output, shape index: {}]
  %s4 = sld [smem:[#allocation0]]
  $region38: #{tpu_custom_call.1} parent=0
    _
  %s6 = ssub.s32 1, %s4
  %s7 = scalar_select 0, %s6, %s4
  $region1: #{tpu_custom_call.1} parent=0
    #allocation3 [shape = 'u8[8192]{0}', space=vmem, size = 0x2000, scoped, tag = 'input window, operand 0, single buffered']
    #allocation4 [shape = 's32[1]{0}', space=sflag, size = 0x4, scoped, tag = 'scoped memory for tpu_custom_call.1']
    #allocation5 [shape = 's32[1]{0}', space=sflag, size = 0x4, scoped, tag = 'scoped memory for tpu_custom_call.1']
    #allocation6 [shape = 'u8[65536]{0}', space=vmem, size = 0x10000, scoped, tag = 'input window, operand 1, single buffered']
    #allocation7 [shape = 's32[1]{0}', space=sflag, size = 0x4, scoped, tag = 'scoped memory for tpu_custom_call.1']
    #allocation8 [shape = 'u8[8192]{0}', space=vmem, size = 0x2000, scoped, tag = 'output window, operand 0, single buffered']
    %8 = vsyncpa [#allocation4], 0
    %9 = vsyncpa [#allocation7], 0
    %10 = vsyncpa [#allocation5], 0
    // Predicated region
    $region2: #{tpu_custom_call.1} parent=1 // pred_check
      _
    $region3: #{tpu_custom_call.1} parent=1 // pred_check_branch
      %12 = sbr.rel (0) target = $region5
    $region4: #{tpu_custom_call.1} parent=1 // pred_region
      %s14 = ssub.s32 256, 256
      %15 = vsyncadd [#allocation4], %s14
      %s16 = sshll.u32 [#allocation3], 4
      %s17 = int_to_ptr.vmem [resolvable:$true] %s16
      %22 = dma.hbm_to_vmem [thread:$0]  %s0, 256, %s17, [#allocation4], 128, 128, 8
    $region5: #{tpu_custom_call.1} parent=1 // pred_fallthru
      _
    // Predicated region
    $region6: #{tpu_custom_call.1} parent=1 // pred_check
      _
    $region7: #{tpu_custom_call.1} parent=1 // pred_check_branch
      %24 = sbr.rel (0) target = $region9
    $region8: #{tpu_custom_call.1} parent=1 // pred_region
      %s26 = ssub.s32 2048, 2048
      %27 = vsyncadd [#allocation7], %s26
      %s28 = sshll.u32 [#allocation6], 4
      %s29 = int_to_ptr.vmem [resolvable:$true] %s28
      %34 = dma.hbm_to_vmem [thread:$0]  %s1, 2048, %s29, [#allocation7], 128, 128, 8
    $region9: #{tpu_custom_call.1} parent=1 // pred_fallthru
      _
    // Predicated region
    $region10: #{tpu_custom_call.1} parent=1 // pred_check
      _
    $region11: #{tpu_custom_call.1} parent=1 // pred_check_branch
      %36 = sbr.rel (0) target = $region13
    $region12: #{tpu_custom_call.1} parent=1 // pred_region
      _
    $region13: #{tpu_custom_call.1} parent=1 // pred_fallthru
      _
    // Predicated region
    $region14: #{tpu_custom_call.1} parent=1 // pred_check
      _
    $region15: #{tpu_custom_call.1} parent=1 // pred_check_branch
      %38 = sbr.rel (0) target = $region17
    $region16: #{tpu_custom_call.1} parent=1 // pred_region
      %39 = dma.done [#allocation4], 256
    $region17: #{tpu_custom_call.1} parent=1 // pred_fallthru
      _
    // Predicated region
    $region18: #{tpu_custom_call.1} parent=1 // pred_check
      _
    $region19: #{tpu_custom_call.1} parent=1 // pred_check_branch
      %41 = sbr.rel (0) target = $region21
    $region20: #{tpu_custom_call.1} parent=1 // pred_region
      %42 = dma.done [#allocation7], 2048
    $region21: #{tpu_custom_call.1} parent=1 // pred_fallthru
      _
    %p43 = scmp.eq.s32.totalorder 0, 0
    // Predicated region
    $region22: #{tpu_custom_call.1} parent=1 // pred_check
      %p44 = pneg %p43
    $region23: #{tpu_custom_call.1} parent=1 // pred_check_branch
      %46 = sbr.rel (%p44) target = $region25
    $region24: #{tpu_custom_call.1} parent=1 // pred_region
      %47 = vst [vmem:[#allocation2] sm:$0xff] 0.0
      %48 = vst [vmem:[#allocation2 + $0x8] sm:$0xff] 0.0
    $region25: #{tpu_custom_call.1} parent=1 // pred_fallthru
      _
    %v49 = vld [vmem:[#allocation2] sm:$0xff]
    %v50 = vld [vmem:[#allocation2 + $0x8] sm:$0xff]
    %v51 = vld [vmem:[#allocation3] sm:$0xff]
    %v52 = vld [vmem:[#allocation3 + $0x8] sm:$0xff]
    %v53 = vld [vmem:[#allocation6] sm:$0xff]
    %v54 = vld [vmem:[#allocation6 + $0x8] sm:$0xff]
    %v55 = vld [vmem:[#allocation6 + $0x10] sm:$0xff]
    %v56 = vld [vmem:[#allocation6 + $0x18] sm:$0xff]
    %v57 = vld [vmem:[#allocation6 + $0x20] sm:$0xff]
    %v58 = vld [vmem:[#allocation6 + $0x28] sm:$0xff]
    %v59 = vld [vmem:[#allocation6 + $0x30] sm:$0xff]
    %v60 = vld [vmem:[#allocation6 + $0x38] sm:$0xff]
    %v61 = vld [vmem:[#allocation6 + $0x40] sm:$0xff]
    %v62 = vld [vmem:[#allocation6 + $0x48] sm:$0xff]
    %v63 = vld [vmem:[#allocation6 + $0x50] sm:$0xff]
    %v64 = vld [vmem:[#allocation6 + $0x58] sm:$0xff]
    %v65 = vld [vmem:[#allocation6 + $0x60] sm:$0xff]
    %v66 = vld [vmem:[#allocation6 + $0x68] sm:$0xff]
    %v67 = vld [vmem:[#allocation6 + $0x70] sm:$0xff]
    %v68 = vld [vmem:[#allocation6 + $0x78] sm:$0xff]
    %69 = vmatprep.subr.mxu0 0.0
    %70 = vmatpush1.msra.mxu0 %v68
    %71 = vmatprep.subr.mxu0 0.0
    %72 = vmatpush1.msra.mxu0 %v67
    %73 = vmatprep.subr.mxu0 0.0
    %74 = vmatpush1.msra.mxu0 %v66
    %75 = vmatprep.subr.mxu0 0.0
    %76 = vmatpush1.msra.mxu0 %v65
    %77 = vmatprep.subr.mxu0 0.0
    %78 = vmatpush1.msra.mxu0 %v64
    %79 = vmatprep.subr.mxu0 0.0
    %80 = vmatpush1.msra.mxu0 %v63
    %81 = vmatprep.subr.mxu0 0.0
    %82 = vmatpush1.msra.mxu0 %v62
    %83 = vmatprep.subr.mxu0 0.0
    %84 = vmatpush1.msra.mxu0 %v61
    %85 = vmatprep.subr.mxu0 0.0
    %86 = vmatpush1.msra.mxu0 %v60
    %87 = vmatprep.subr.mxu0 0.0
    %88 = vmatpush1.msra.mxu0 %v59
    %89 = vmatprep.subr.mxu0 0.0
    %90 = vmatpush1.msra.mxu0 %v58
    %91 = vmatprep.subr.mxu0 0.0
    %92 = vmatpush1.msra.mxu0 %v57
    %93 = vmatprep.subr.mxu0 0.0
    %94 = vmatpush1.msra.mxu0 %v56
    %95 = vmatprep.subr.mxu0 0.0
    %96 = vmatpush1.msra.mxu0 %v55
    %97 = vmatprep.subr.mxu0 0.0
    %98 = vmatpush1.msra.mxu0 %v54
    %99 = vmatprep.subr.mxu0 0.0
    %100 = vmatpush1.msra.mxu0 %v53
    %101 = vmatprep.subr.mxu0 0.0
    %102 = vmatpush2.msra.mxu0 0.0
    %103 = vmatprep.subr.mxu0 0.0
    %104 = vmatpush2.msra.mxu0 0.0
    %105 = vmatprep.subr.mxu0 0.0
    %106 = vmatpush2.msra.mxu0 0.0
    %107 = vmatprep.subr.mxu0 0.0
    %108 = vmatpush2.msra.mxu0 0.0
    %109 = vmatprep.subr.mxu0 0.0
    %110 = vmatpush2.msra.mxu0 0.0
    %111 = vmatprep.subr.mxu0 0.0
    %112 = vmatpush2.msra.mxu0 0.0
    %113 = vmatprep.subr.mxu0 0.0
    %114 = vmatpush2.msra.mxu0 0.0
    %115 = vmatprep.subr.mxu0 0.0
    %116 = vmatpush2.msra.mxu0 0.0
    %117 = vmatprep.subr.mxu0 0.0
    %118 = vmatpush2.msra.mxu0 0.0
    %119 = vmatprep.subr.mxu0 0.0
    %120 = vmatpush2.msra.mxu0 0.0
    %121 = vmatprep.subr.mxu0 0.0
    %122 = vmatpush2.msra.mxu0 0.0
    %123 = vmatprep.subr.mxu0 0.0
    %124 = vmatpush2.msra.mxu0 0.0
    %125 = vmatprep.subr.mxu0 0.0
    %126 = vmatpush2.msra.mxu0 0.0
    %127 = vmatprep.subr.mxu0 0.0
    %128 = vmatpush2.msra.mxu0 0.0
    %129 = vmatprep.subr.mxu0 0.0
    %130 = vmatpush2.msra.mxu0 0.0
    %131 = vmatprep.subr.mxu0 0.0
    %132 = vmatpush2.msra.mxu0 0.0
    %133 = vmatprep.mubr.f32.mxu0 0.0
    %134 = vmatmul.mubr.f32.gmra.mxu0 %v51
    %v135 = vpop.f32.mrf.mxu0
    %v136 = vadd.f32 0.0, %v135
    %v137 = vpop.f32.mrf.mxu0
    %138 = vmatprep.mubr.f32.mxu0 0.0
    %139 = vmatmul.mubr.f32.gmra.mxu0 %v52
    %v140 = vpop.f32.mrf.mxu0
    %v141 = vadd.f32 0.0, %v140
    %v142 = vpop.f32.mrf.mxu0
    %143 = vdwg.mxu0
    %v144 = vadd.f32 %v49, %v136
    %v145 = vadd.f32 %v50, %v141
    %146 = vst [vmem:[#allocation2] sm:$0xff] %v144
    %147 = vst [vmem:[#allocation2 + $0x8] sm:$0xff] %v145
    // Predicated region
    $region26: #{tpu_custom_call.1} parent=1 // pred_check
      %p148 = pneg %p43
    $region27: #{tpu_custom_call.1} parent=1 // pred_check_branch
      %150 = sbr.rel (%p148) target = $region29
    $region28: #{tpu_custom_call.1} parent=1 // pred_region
      %v151 = vld [vmem:[#allocation2] sm:$0xff]
      %v152 = vld [vmem:[#allocation2 + $0x8] sm:$0xff]
      %v153 = vld [vmem:[%s2] sm:$0x1]
      %v155 = vlaneseq
      %v156 = vshrl.u32 %v155, 7
      %v157 = vsub.s32 0, %v156
      %v158 = vrot.slane %v153, %v157
      %v160 = vadd.f32 %v151, %v158
      %v161 = vadd.f32 %v152, %v158
      %162 = vst [vmem:[#allocation8] sm:$0xff] %v160
      %163 = vst [vmem:[#allocation8 + $0x8] sm:$0xff] %v161
    $region29: #{tpu_custom_call.1} parent=1 // pred_fallthru
      _
    // Predicated region
    $region30: #{tpu_custom_call.1} parent=1 // pred_check
      _
    $region31: #{tpu_custom_call.1} parent=1 // pred_check_branch
      %165 = sbr.rel (0) target = $region33
    $region32: #{tpu_custom_call.1} parent=1 // pred_region
      %s167 = ssub.s32 256, 256
      %168 = vsyncadd [#allocation5], %s167
      %s169 = sshll.u32 [#allocation8], 4
      %s170 = int_to_ptr.vmem [resolvable:$true] %s169
      %175 = dma.vmem_to_hbm [thread:$0]  %s170, 256, %s3, [#allocation5], 128, 128, 8
    $region33: #{tpu_custom_call.1} parent=1 // pred_fallthru
      _
    // Predicated region
    $region34: #{tpu_custom_call.1} parent=1 // pred_check
      _
    $region35: #{tpu_custom_call.1} parent=1 // pred_check_branch
      %177 = sbr.rel (0) target = $region37
    $region36: #{tpu_custom_call.1} parent=1 // pred_region
      %178 = dma.done [#allocation5], 256
    $region37: #{tpu_custom_call.1} parent=1 // pred_fallthru
      _
    %179 = vsyncpa [#allocation4], 1
    %180 = vsyncpa [#allocation7], 1
    %181 = vsyncpa [#allocation5], 1

</llo_original>
